<compile_context>
chip_gen: v7x
topology: tpu7x:2x2x1
jax: 0.10.0
libtpu: 0.0.40
codegen_flags: <defaults>
</compile_context>

<pallas_src>
import functools

import jax
import jax.numpy as jnp
import numpy as np
from jax import lax
from jax.experimental import pallas as pl
from jax.experimental.pallas import tpu as pltpu


def _bbox_loss_kernel(flag_ref, pred_ref, target_ref, out_ref, acc_ref,
                      *, coord_weight, conf_weight, has_conf, n_true, block_n):
    pid = pl.program_id(0)
    last = pl.num_programs(0) - 1

    @pl.when(pid == 0)
    def _():
        acc_ref[0] = jnp.float32(0.0)
        acc_ref[1] = jnp.float32(0.0)

    pred = pred_ref[...]    # (8, block_n) f32, channels on sublanes, boxes on lanes
    tgt = target_ref[...]

    # Valid-lane mask for this tile (boxes beyond the true N are zero padding).
    lane = lax.broadcasted_iota(jnp.int32, (1, block_n), 1)
    valid = (lane + pid * block_n) < n_true

    # ---- coord loss: SmoothL1 (beta = 1.0), summed here, mean at finalize ----
    pc = pred[0:4, :]
    tc = tgt[0:4, :]
    diff = pc - tc
    ad = jnp.abs(diff)
    sl1 = jnp.where(ad < 1.0, 0.5 * diff * diff, ad - 0.5)
    sl1 = jnp.where(valid, sl1, 0.0)
    acc_ref[0] = acc_ref[0] + jnp.sum(sl1)

    if has_conf:
        # ---- IoU between pred/target boxes (center-size -> corners) ----
        px, py = pred[0:1, :], pred[1:2, :]
        pw, ph = pred[2:3, :], pred[3:4, :]
        tx, ty = tgt[0:1, :], tgt[1:2, :]
        tw, th = tgt[2:3, :], tgt[3:4, :]

        px1, py1 = px - 0.5 * pw, py - 0.5 * ph
        px2, py2 = px + 0.5 * pw, py + 0.5 * ph
        tx1, ty1 = tx - 0.5 * tw, ty - 0.5 * th
        tx2, ty2 = tx + 0.5 * tw, ty + 0.5 * th

        ix1 = jnp.maximum(px1, tx1)
        iy1 = jnp.maximum(py1, ty1)
        ix2 = jnp.minimum(px2, tx2)
        iy2 = jnp.minimum(py2, ty2)
        inter = jnp.maximum(ix2 - ix1, 0.0) * jnp.maximum(iy2 - iy1, 0.0)
        area_p = (px2 - px1) * (py2 - py1)
        area_t = (tx2 - tx1) * (ty2 - ty1)
        union = area_p + area_t - inter
        # Divide routed to the EUP (separate VLIW slot).
        iou = jnp.clip(inter * pl.reciprocal(union + 1e-6, approx=True), 0.0, 1.0)

        # ---- conf loss: MSE(sigmoid(pred_conf), target_conf or IoU) ----
        pconf = pred[4:5, :]
        tconf = tgt[4:5, :]
        use_iou = flag_ref[0] != 0            # global predicate, computed in wrapper
        tconf_eff = jnp.where(use_iou, iou, tconf)
        sconf = jax.nn.sigmoid(pconf)         # exp on the EUP
        se = (sconf - tconf_eff) ** 2
        se = jnp.where(valid, se, 0.0)
        acc_ref[1] = acc_ref[1] + jnp.sum(se)

    @pl.when(pid == last)
    def _():
        coord_loss = acc_ref[0] * jnp.float32(1.0 / (n_true * 4))
        if has_conf:
            conf_loss = acc_ref[1] * jnp.float32(1.0 / n_true)
        else:
            conf_loss = jnp.float32(0.0)
        out_ref[0] = coord_weight * coord_loss + conf_weight * conf_loss
        out_ref[1] = coord_loss
        out_ref[2] = conf_loss


def _round_up(x, m):
    return ((x + m - 1) // m) * m


def advanced_bbox_loss(pred, target, coord_weight=1.0, conf_weight=0.1,
                       tile_n=2048):
    """Returns (total_loss, coord_loss, conf_loss) as float32 scalars."""
    pred = jnp.asarray(pred, jnp.float32)
    target = jnp.asarray(target, jnp.float32)
    assert pred.ndim == 2 and target.ndim == 2
    n = pred.shape[0]
    has_conf = (pred.shape[1] > 4) and (target.shape[1] > 4)

    # Cross-tile reduction for the IoU-substitution predicate is done here
    # (cheap wrapper-side reduce) and passed to the kernel via scalar prefetch,
    # so per-tile evaluation can't silently change semantics.
    if has_conf:
        tconf = target[:, 4]
        use_iou = jnp.logical_or(jnp.all(tconf == 1.0), jnp.all(tconf == 0.0))
        flag = use_iou.astype(jnp.int32).reshape((1,))
    else:
        flag = jnp.zeros((1,), jnp.int32)

    # Lane-dense layout: channels (<=5) -> sublanes padded to 8,
    # boxes -> lanes padded to a multiple of the tile size.
    block_n = min(_round_up(tile_n, 128), _round_up(n, 128))
    n_pad = _round_up(n, block_n)
    grid = n_pad // block_n

    def to_layout(x):
        xt = x[:, :5].T                                   # (C<=5, N)
        return jnp.pad(xt, ((0, 8 - xt.shape[0]), (0, n_pad - n)))

    pred_t = to_layout(pred)
    target_t = to_layout(target)

    kernel = functools.partial(
        _bbox_loss_kernel,
        coord_weight=float(coord_weight),
        conf_weight=float(conf_weight),
        has_conf=has_conf,
        n_true=n,
        block_n=block_n,
    )

    out = pl.pallas_call(
        kernel,
        out_shape=jax.ShapeDtypeStruct((3,), jnp.float32),
        grid_spec=pltpu.PrefetchScalarGridSpec(
            num_scalar_prefetch=1,
            grid=(grid,),
            in_specs=[
                pl.BlockSpec((8, block_n), lambda i, flag: (0, i)),
                pl.BlockSpec((8, block_n), lambda i, flag: (0, i)),
            ],
            out_specs=pl.BlockSpec(memory_space=pltpu.SMEM),
            scratch_shapes=[pltpu.SMEM((2,), jnp.float32)],
        ),
        compiler_params=pltpu.CompilerParams(
            dimension_semantics=("arbitrary",)),
    )(flag, pred_t, target_t)
    return out[0], out[1], out[2]


def _reference(pred, target, coord_weight=1.0, conf_weight=0.1):
    pred = pred.astype(jnp.float32)
    target = target.astype(jnp.float32)
    pc, tc = pred[:, :4], target[:, :4]
    d = pc - tc
    ad = jnp.abs(d)
    coord_loss = jnp.mean(jnp.where(ad < 1.0, 0.5 * d * d, ad - 0.5))
    conf_loss = jnp.float32(0.0)
    if pred.shape[1] > 4 and target.shape[1] > 4:
        def corners(b):
            return jnp.stack([b[:, 0] - b[:, 2] / 2, b[:, 1] - b[:, 3] / 2,
                              b[:, 0] + b[:, 2] / 2, b[:, 1] + b[:, 3] / 2], axis=1)

        b1, b2 = corners(pc), corners(tc)
        x1 = jnp.maximum(b1[:, 0], b2[:, 0]); y1 = jnp.maximum(b1[:, 1], b2[:, 1])
        x2 = jnp.minimum(b1[:, 2], b2[:, 2]); y2 = jnp.minimum(b1[:, 3], b2[:, 3])
        inter = jnp.clip(x2 - x1, 0) * jnp.clip(y2 - y1, 0)
        a1 = (b1[:, 2] - b1[:, 0]) * (b1[:, 3] - b1[:, 1])
        a2 = (b2[:, 2] - b2[:, 0]) * (b2[:, 3] - b2[:, 1])
        iou = jnp.clip(inter / (a1 + a2 - inter + 1e-6), 0.0, 1.0)
        pconf, tconf = pred[:, 4], target[:, 4]
        use_iou = jnp.logical_or(jnp.all(tconf == 1.0), jnp.all(tconf == 0.0))
        tconf_eff = jnp.where(use_iou, iou, tconf)
        conf_loss = jnp.mean((jax.nn.sigmoid(pconf) - tconf_eff) ** 2)
    total = coord_weight * coord_loss + conf_weight * conf_loss
    return total, coord_loss, conf_loss


if __name__ == "__main__":
    key = jax.random.PRNGKey(0)
    k1, k2, k3, k4, k5 = jax.random.split(key, 5)

    # Case 1: tiny demo (N=8), all-ones conf target -> IoU substitution path, 1 tile.
    n1 = 8
    pred1 = jax.random.normal(k1, (n1, 5), dtype=jnp.float32)
    tgt_coords1 = jnp.abs(jax.random.normal(k2, (n1, 4), dtype=jnp.float32)) + 0.5
    target1 = jnp.concatenate([tgt_coords1, jnp.ones((n1, 1), jnp.float32)], axis=1)

    # Case 2: larger N with arbitrary conf targets -> direct-target path,
    # multiple grid tiles plus a masked partial last tile.
    n2 = 300
    pred2 = jax.random.normal(k3, (n2, 5), dtype=jnp.float32)
    tgt_coords2 = jnp.abs(jax.random.normal(k4, (n2, 4), dtype=jnp.float32)) + 0.5
    tgt_conf2 = jax.random.uniform(k5, (n2, 1), dtype=jnp.float32)
    target2 = jnp.concatenate([tgt_coords2, tgt_conf2], axis=1)

    # Case 3: coords only (C=4) -> conf loss is exactly zero.
    pred3 = pred1[:, :4]
    target3 = target1[:, :4]

    cases = [
        (pred1, target1, 2048),
        (pred2, target2, 128),
        (pred3, target3, 2048),
    ]
    for pred, target, tile in cases:
        out = advanced_bbox_loss(pred, target, coord_weight=1.0,
                                 conf_weight=0.1, tile_n=tile)
        out = jax.block_until_ready(out)
        ref = _reference(pred, target, coord_weight=1.0, conf_weight=0.1)
        for got, want in zip(out, ref):
            np.testing.assert_allclose(np.asarray(got), np.asarray(want),
                                       rtol=5e-3, atol=1e-5)

    print("KERNEL_OK")
</pallas_src>

<mosaic_0001>
module attributes {stable_mosaic.version = 11 : i64} {
  func.func @_bbox_loss_kernel(%arg0: i32, %arg1: memref<1xi32, #tpu.memory_space<smem>>, %arg2: memref<8x128xf32, #tpu.memory_space<vmem>>, %arg3: memref<8x128xf32, #tpu.memory_space<vmem>>, %arg4: memref<3xf32, #tpu.memory_space<smem>>, %arg5: memref<2xf32, #tpu.memory_space<smem>>) attributes {dimension_semantics = [#tpu.dimension_semantics<arbitrary>], iteration_bounds = array<i64: 1>, scalar_prefetch = 1 : i64, scratch_operands = 1 : i64, tpu.core_type = #tpu.core_type<tc>, window_params = [{transform_indices = @transform_0, window_bounds = array<i64: 8, 128>}, {transform_indices = @transform_1, window_bounds = array<i64: 8, 128>}, {transform_indices = @transform_2, window_bounds = array<i64: 3>}]} {
    %c0_i32 = arith.constant 0 : i32
    %0 = arith.cmpi eq, %arg0, %c0_i32 : i32
    %1 = arith.extui %0 : i1 to i32
    %c0_i32_0 = arith.constant 0 : i32
    %2 = arith.cmpi ne, %1, %c0_i32_0 : i32
    scf.if %2 {
      %cst_31 = arith.constant 0.000000e+00 : f32
      %c0_32 = arith.constant 0 : index
      %117 = memref.load %arg5[%c0_32] : memref<2xf32, #tpu.memory_space<smem>>
      memref.store %cst_31, %arg5[%c0_32] : memref<2xf32, #tpu.memory_space<smem>>
      %cst_33 = arith.constant 0.000000e+00 : f32
      %c1_34 = arith.constant 1 : index
      %118 = memref.load %arg5[%c1_34] : memref<2xf32, #tpu.memory_space<smem>>
      memref.store %cst_33, %arg5[%c1_34] : memref<2xf32, #tpu.memory_space<smem>>
    } else {
    }
    %c0 = arith.constant 0 : index
    %c0_1 = arith.constant 0 : index
    %3 = vector.load %arg2[%c0, %c0_1] : memref<8x128xf32, #tpu.memory_space<vmem>>, vector<8x128xf32>
    %c0_2 = arith.constant 0 : index
    %c0_3 = arith.constant 0 : index
    %4 = vector.load %arg3[%c0_2, %c0_3] : memref<8x128xf32, #tpu.memory_space<vmem>>, vector<8x128xf32>
    %5 = tpu.iota {dimensions = array<i32: 1>} : vector<1x128xi32>
    %c128_i32 = arith.constant 128 : i32
    %6 = arith.muli %arg0, %c128_i32 : i32
    %7 = vector.broadcast %6 : i32 to vector<1x128xi32>
    %8 = arith.addi %5, %7 : vector<1x128xi32>
    %c8_i32 = arith.constant 8 : i32
    %9 = vector.broadcast %c8_i32 : i32 to vector<1x128xi32>
    %10 = arith.cmpi slt, %8, %9 : vector<1x128xi32>
    %11 = vector.extract_strided_slice %3 {offsets = [0, 0], sizes = [4, 128], strides = [1, 1]} : vector<8x128xf32> to vector<4x128xf32>
    %12 = vector.extract_strided_slice %4 {offsets = [0, 0], sizes = [4, 128], strides = [1, 1]} : vector<8x128xf32> to vector<4x128xf32>
    %13 = arith.subf %11, %12 : vector<4x128xf32>
    %14 = math.absf %13 : vector<4x128xf32>
    %cst = arith.constant 1.000000e+00 : f32
    %15 = vector.broadcast %cst : f32 to vector<4x128xf32>
    %16 = arith.cmpf olt, %14, %15 : vector<4x128xf32>
    %cst_4 = arith.constant 5.000000e-01 : f32
    %17 = vector.broadcast %cst_4 : f32 to vector<4x128xf32>
    %18 = arith.mulf %17, %13 : vector<4x128xf32>
    %19 = arith.mulf %18, %13 : vector<4x128xf32>
    %cst_5 = arith.constant 5.000000e-01 : f32
    %20 = vector.broadcast %cst_5 : f32 to vector<4x128xf32>
    %21 = arith.subf %14, %20 : vector<4x128xf32>
    %22 = arith.select %16, %19, %21 : vector<4x128xi1>, vector<4x128xf32>
    %cst_6 = arith.constant 0.000000e+00 : f32
    %23 = vector.shape_cast %10 : vector<1x128xi1> to vector<1x128xi1>
    %24 = vector.broadcast %23 : vector<1x128xi1> to vector<4x128xi1>
    %25 = vector.broadcast %cst_6 : f32 to vector<4x128xf32>
    %26 = arith.select %24, %22, %25 : vector<4x128xi1>, vector<4x128xf32>
    %c0_7 = arith.constant 0 : index
    %27 = memref.load %arg5[%c0_7] : memref<2xf32, #tpu.memory_space<smem>>
    %28 = vector.shape_cast %26 : vector<4x128xf32> to vector<1x4x128xf32>
    %cst_8 = arith.constant dense<0.000000e+00> : vector<1xf32>
    %29 = vector.multi_reduction <add>, %28, %cst_8 [1, 2] : vector<1x4x128xf32> to vector<1xf32>
    %30 = vector.shape_cast %29 : vector<1xf32> to vector<1x1x1xf32>
    %31 = vector.extract %30[0, 0, 0] : f32 from vector<1x1x1xf32>
    %32 = arith.addf %27, %31 : f32
    %c0_9 = arith.constant 0 : index
    %33 = memref.load %arg5[%c0_9] : memref<2xf32, #tpu.memory_space<smem>>
    memref.store %32, %arg5[%c0_9] : memref<2xf32, #tpu.memory_space<smem>>
    %34 = vector.extract_strided_slice %3 {offsets = [0, 0], sizes = [1, 128], strides = [1, 1]} : vector<8x128xf32> to vector<1x128xf32>
    %35 = vector.extract_strided_slice %3 {offsets = [1, 0], sizes = [1, 128], strides = [1, 1]} : vector<8x128xf32> to vector<1x128xf32>
    %36 = vector.extract_strided_slice %3 {offsets = [2, 0], sizes = [1, 128], strides = [1, 1]} : vector<8x128xf32> to vector<1x128xf32>
    %37 = vector.extract_strided_slice %3 {offsets = [3, 0], sizes = [1, 128], strides = [1, 1]} : vector<8x128xf32> to vector<1x128xf32>
    %38 = vector.extract_strided_slice %4 {offsets = [0, 0], sizes = [1, 128], strides = [1, 1]} : vector<8x128xf32> to vector<1x128xf32>
    %39 = vector.extract_strided_slice %4 {offsets = [1, 0], sizes = [1, 128], strides = [1, 1]} : vector<8x128xf32> to vector<1x128xf32>
    %40 = vector.extract_strided_slice %4 {offsets = [2, 0], sizes = [1, 128], strides = [1, 1]} : vector<8x128xf32> to vector<1x128xf32>
    %41 = vector.extract_strided_slice %4 {offsets = [3, 0], sizes = [1, 128], strides = [1, 1]} : vector<8x128xf32> to vector<1x128xf32>
    %cst_10 = arith.constant 5.000000e-01 : f32
    %42 = vector.broadcast %cst_10 : f32 to vector<1x128xf32>
    %43 = arith.mulf %42, %36 : vector<1x128xf32>
    %44 = arith.subf %34, %43 : vector<1x128xf32>
    %cst_11 = arith.constant 5.000000e-01 : f32
    %45 = vector.broadcast %cst_11 : f32 to vector<1x128xf32>
    %46 = arith.mulf %45, %37 : vector<1x128xf32>
    %47 = arith.subf %35, %46 : vector<1x128xf32>
    %cst_12 = arith.constant 5.000000e-01 : f32
    %48 = vector.broadcast %cst_12 : f32 to vector<1x128xf32>
    %49 = arith.mulf %48, %36 : vector<1x128xf32>
    %50 = arith.addf %34, %49 : vector<1x128xf32>
    %cst_13 = arith.constant 5.000000e-01 : f32
    %51 = vector.broadcast %cst_13 : f32 to vector<1x128xf32>
    %52 = arith.mulf %51, %37 : vector<1x128xf32>
    %53 = arith.addf %35, %52 : vector<1x128xf32>
    %cst_14 = arith.constant 5.000000e-01 : f32
    %54 = vector.broadcast %cst_14 : f32 to vector<1x128xf32>
    %55 = arith.mulf %54, %40 : vector<1x128xf32>
    %56 = arith.subf %38, %55 : vector<1x128xf32>
    %cst_15 = arith.constant 5.000000e-01 : f32
    %57 = vector.broadcast %cst_15 : f32 to vector<1x128xf32>
    %58 = arith.mulf %57, %41 : vector<1x128xf32>
    %59 = arith.subf %39, %58 : vector<1x128xf32>
    %cst_16 = arith.constant 5.000000e-01 : f32
    %60 = vector.broadcast %cst_16 : f32 to vector<1x128xf32>
    %61 = arith.mulf %60, %40 : vector<1x128xf32>
    %62 = arith.addf %38, %61 : vector<1x128xf32>
    %cst_17 = arith.constant 5.000000e-01 : f32
    %63 = vector.broadcast %cst_17 : f32 to vector<1x128xf32>
    %64 = arith.mulf %63, %41 : vector<1x128xf32>
    %65 = arith.addf %39, %64 : vector<1x128xf32>
    %66 = arith.maximumf %44, %56 : vector<1x128xf32>
    %67 = arith.maximumf %47, %59 : vector<1x128xf32>
    %68 = arith.minimumf %50, %62 : vector<1x128xf32>
    %69 = arith.minimumf %53, %65 : vector<1x128xf32>
    %70 = arith.subf %68, %66 : vector<1x128xf32>
    %cst_18 = arith.constant 0.000000e+00 : f32
    %71 = vector.broadcast %cst_18 : f32 to vector<1x128xf32>
    %72 = arith.maximumf %70, %71 : vector<1x128xf32>
    %73 = arith.subf %69, %67 : vector<1x128xf32>
    %cst_19 = arith.constant 0.000000e+00 : f32
    %74 = vector.broadcast %cst_19 : f32 to vector<1x128xf32>
    %75 = arith.maximumf %73, %74 : vector<1x128xf32>
    %76 = arith.mulf %72, %75 : vector<1x128xf32>
    %77 = arith.subf %50, %44 : vector<1x128xf32>
    %78 = arith.subf %53, %47 : vector<1x128xf32>
    %79 = arith.mulf %77, %78 : vector<1x128xf32>
    %80 = arith.subf %62, %56 : vector<1x128xf32>
    %81 = arith.subf %65, %59 : vector<1x128xf32>
    %82 = arith.mulf %80, %81 : vector<1x128xf32>
    %83 = arith.addf %79, %82 : vector<1x128xf32>
    %84 = arith.subf %83, %76 : vector<1x128xf32>
    %cst_20 = arith.constant 9.99999997E-7 : f32
    %85 = vector.broadcast %cst_20 : f32 to vector<1x128xf32>
    %86 = arith.addf %84, %85 : vector<1x128xf32>
    %87 = tpu.reciprocal %86 {approx = true} : vector<1x128xf32> -> vector<1x128xf32>
    %88 = arith.mulf %76, %87 : vector<1x128xf32>
    %cst_21 = arith.constant 0.000000e+00 : f32
    %cst_22 = arith.constant 1.000000e+00 : f32
    %89 = vector.broadcast %cst_21 : f32 to vector<1x128xf32>
    %90 = arith.maximumf %89, %88 : vector<1x128xf32>
    %91 = vector.broadcast %cst_22 : f32 to vector<1x128xf32>
    %92 = arith.minimumf %91, %90 : vector<1x128xf32>
    %93 = vector.extract_strided_slice %3 {offsets = [4, 0], sizes = [1, 128], strides = [1, 1]} : vector<8x128xf32> to vector<1x128xf32>
    %94 = vector.extract_strided_slice %4 {offsets = [4, 0], sizes = [1, 128], strides = [1, 1]} : vector<8x128xf32> to vector<1x128xf32>
    %c0_23 = arith.constant 0 : index
    %95 = memref.load %arg1[%c0_23] : memref<1xi32, #tpu.memory_space<smem>>
    %c0_i32_24 = arith.constant 0 : i32
    %96 = arith.cmpi ne, %95, %c0_i32_24 : i32
    %97 = arith.select %96, %92, %94 : vector<1x128xf32>
    %98 = arith.negf %93 : vector<1x128xf32>
    %99 = math.exp %98 : vector<1x128xf32>
    %cst_25 = arith.constant 1.000000e+00 : f32
    %100 = vector.broadcast %cst_25 : f32 to vector<1x128xf32>
    %101 = arith.addf %100, %99 : vector<1x128xf32>
    %102 = arith.divf %100, %101 : vector<1x128xf32>
    %103 = arith.subf %102, %97 : vector<1x128xf32>
    %104 = arith.mulf %103, %103 : vector<1x128xf32>
    %cst_26 = arith.constant 0.000000e+00 : f32
    %105 = vector.broadcast %cst_26 : f32 to vector<1x128xf32>
    %106 = arith.select %10, %104, %105 : vector<1x128xi1>, vector<1x128xf32>
    %c1 = arith.constant 1 : index
    %107 = memref.load %arg5[%c1] : memref<2xf32, #tpu.memory_space<smem>>
    %108 = vector.shape_cast %106 : vector<1x128xf32> to vector<1x1x128xf32>
    %cst_27 = arith.constant dense<0.000000e+00> : vector<1xf32>
    %109 = vector.multi_reduction <add>, %108, %cst_27 [1, 2] : vector<1x1x128xf32> to vector<1xf32>
    %110 = vector.shape_cast %109 : vector<1xf32> to vector<1x1x1xf32>
    %111 = vector.extract %110[0, 0, 0] : f32 from vector<1x1x1xf32>
    %112 = arith.addf %107, %111 : f32
    %c1_28 = arith.constant 1 : index
    %113 = memref.load %arg5[%c1_28] : memref<2xf32, #tpu.memory_space<smem>>
    memref.store %112, %arg5[%c1_28] : memref<2xf32, #tpu.memory_space<smem>>
    %c0_i32_29 = arith.constant 0 : i32
    %114 = arith.cmpi eq, %arg0, %c0_i32_29 : i32
    %115 = arith.extui %114 : i1 to i32
    %c0_i32_30 = arith.constant 0 : i32
    %116 = arith.cmpi ne, %115, %c0_i32_30 : i32
    scf.if %116 {
      %c0_31 = arith.constant 0 : index
      %117 = memref.load %arg5[%c0_31] : memref<2xf32, #tpu.memory_space<smem>>
      %cst_32 = arith.constant 3.125000e-02 : f32
      %118 = arith.mulf %117, %cst_32 : f32
      %c1_33 = arith.constant 1 : index
      %119 = memref.load %arg5[%c1_33] : memref<2xf32, #tpu.memory_space<smem>>
      %cst_34 = arith.constant 1.250000e-01 : f32
      %120 = arith.mulf %119, %cst_34 : f32
      %cst_35 = arith.constant 1.000000e+00 : f32
      %121 = arith.mulf %cst_35, %118 : f32
      %cst_36 = arith.constant 1.000000e-01 : f32
      %122 = arith.mulf %cst_36, %120 : f32
      %123 = arith.addf %121, %122 : f32
      %c0_37 = arith.constant 0 : index
      %124 = memref.load %arg4[%c0_37] : memref<3xf32, #tpu.memory_space<smem>>
      memref.store %123, %arg4[%c0_37] : memref<3xf32, #tpu.memory_space<smem>>
      %c1_38 = arith.constant 1 : index
      %125 = memref.load %arg4[%c1_38] : memref<3xf32, #tpu.memory_space<smem>>
      memref.store %118, %arg4[%c1_38] : memref<3xf32, #tpu.memory_space<smem>>
      %c2 = arith.constant 2 : index
      %126 = memref.load %arg4[%c2] : memref<3xf32, #tpu.memory_space<smem>>
      memref.store %120, %arg4[%c2] : memref<3xf32, #tpu.memory_space<smem>>
    } else {
    }
    return
  }
  func.func @transform_0(%arg0: i32, %arg1: memref<1xi32, #tpu.memory_space<smem>>) -> (i32, i32) {
    %c0_i32 = arith.constant 0 : i32
    %c0_i32_0 = arith.constant 0 : i32
    return %c0_i32, %arg0 : i32, i32
  }
  func.func @transform_1(%arg0: i32, %arg1: memref<1xi32, #tpu.memory_space<smem>>) -> (i32, i32) {
    %c0_i32 = arith.constant 0 : i32
    %c0_i32_0 = arith.constant 0 : i32
    return %c0_i32, %arg0 : i32, i32
  }
  func.func @transform_2(%arg0: i32, %arg1: memref<1xi32, #tpu.memory_space<smem>>) -> i32 {
    %c0_i32 = arith.constant 0 : i32
    %c0_i32_0 = arith.constant 0 : i32
    return %c0_i32 : i32
  }
}

</mosaic_0001>

<llo_original>
// kernel: tpu_custom_call.1
$region0: #{tpu_custom_call.1}
  #allocation0 [shape = 'u32[]', space=smem, size = 0x4, offset = 0x4, fixed_abs, tag = 'smem constant byte address 0x4 - core index']
  #allocation1 [shape = 'u32[144,128]{1,0:T(1,128)}', space=vmem, size = 0x12000, scoped, tag = 'internal scratch']
  #allocation2 [shape = 'f32[2]{0:T(128)}', space=smem, size = 0x200, scoped, tag = 'scratch operand']
  #allocation3 [shape = 's32[1]{0}', space=sflag, size = 0x4, scoped, tag = 'scoped memory for tpu_custom_call.1']
  #allocation4 [shape = 's32[1]{0:T(128)S(6)}', space=smem, size = 0x200, scoped, tag = 'prefetched SMEM operand 0']
  %s0 = inlined_call_operand.<no memory space> [shape: s32[1], index: 0, kind: input, shape index: {}]
  %s1 = inlined_call_operand.hbm [shape: f32[8,128], index: 1, kind: input, shape index: {}]
  %s2 = inlined_call_operand.hbm [shape: f32[8,128], index: 2, kind: input, shape index: {}]
  %s3 = inlined_call_operand.hbm [shape: f32[3], index: 3, kind: output, shape index: {}]
  %s4 = sld [smem:[#allocation0]]
  $region34: #{tpu_custom_call.1} parent=0
    _
  %s6 = ssub.s32 1, %s4
  %s7 = scalar_select 0, %s6, %s4
  %8 = sst [smem:[#allocation4]] %s0
  $region1: #{tpu_custom_call.1} parent=0
    #allocation5 [shape = 'u8[4096]{0}', space=vmem, size = 0x1000, scoped, tag = 'input window, operand 1, single buffered']
    #allocation6 [shape = 's32[1]{0}', space=sflag, size = 0x4, scoped, tag = 'scoped memory for tpu_custom_call.1']
    #allocation7 [shape = 's32[1]{0}', space=sflag, size = 0x4, scoped, tag = 'scoped memory for tpu_custom_call.1']
    #allocation8 [shape = 'u8[4096]{0}', space=vmem, size = 0x1000, scoped, tag = 'input window, operand 2, single buffered']
    #allocation9 [shape = 's32[1]{0}', space=sflag, size = 0x4, scoped, tag = 'scoped memory for tpu_custom_call.1']
    #allocation10 [shape = 'u8[512]{0}', space=smem, size = 0x200, scoped, tag = 'output window, operand 0, single buffered']
    %9 = vsyncpa [#allocation6], 0
    %10 = vsyncpa [#allocation9], 0
    %11 = vsyncpa [#allocation7], 0
    // Predicated region
    $region2: #{tpu_custom_call.1} parent=1 // pred_check
      _
    $region3: #{tpu_custom_call.1} parent=1 // pred_check_branch
      %13 = sbr.rel (0) target = $region5
    $region4: #{tpu_custom_call.1} parent=1 // pred_region
      %s15 = ssub.s32 128, 128
      %16 = vsyncadd [#allocation6], %s15
      %s18 = sshll.u32 [#allocation5], 4
      %s19 = int_to_ptr.vmem [resolvable:$true] %s18
      %21 = dma.hbm_to_vmem [thread:$0]  %s1, 128, %s19, [#allocation6]
    $region5: #{tpu_custom_call.1} parent=1 // pred_fallthru
      _
    // Predicated region
    $region6: #{tpu_custom_call.1} parent=1 // pred_check
      _
    $region7: #{tpu_custom_call.1} parent=1 // pred_check_branch
      %23 = sbr.rel (0) target = $region9
    $region8: #{tpu_custom_call.1} parent=1 // pred_region
      %s25 = ssub.s32 128, 128
      %26 = vsyncadd [#allocation9], %s25
      %s28 = sshll.u32 [#allocation8], 4
      %s29 = int_to_ptr.vmem [resolvable:$true] %s28
      %31 = dma.hbm_to_vmem [thread:$0]  %s2, 128, %s29, [#allocation9]
    $region9: #{tpu_custom_call.1} parent=1 // pred_fallthru
      _
    // Predicated region
    $region10: #{tpu_custom_call.1} parent=1 // pred_check
      _
    $region11: #{tpu_custom_call.1} parent=1 // pred_check_branch
      %33 = sbr.rel (0) target = $region13
    $region12: #{tpu_custom_call.1} parent=1 // pred_region
      %34 = dma.done [#allocation6], 128
    $region13: #{tpu_custom_call.1} parent=1 // pred_fallthru
      _
    // Predicated region
    $region14: #{tpu_custom_call.1} parent=1 // pred_check
      _
    $region15: #{tpu_custom_call.1} parent=1 // pred_check_branch
      %36 = sbr.rel (0) target = $region17
    $region16: #{tpu_custom_call.1} parent=1 // pred_region
      %37 = dma.done [#allocation9], 128
    $region17: #{tpu_custom_call.1} parent=1 // pred_fallthru
      _
    %p38 = scmp.eq.s32.totalorder 0, 0
    // Predicated region
    $region18: #{tpu_custom_call.1} parent=1 // pred_check
      %p39 = pneg %p38
    $region19: #{tpu_custom_call.1} parent=1 // pred_check_branch
      %41 = sbr.rel (%p39) target = $region21
    $region20: #{tpu_custom_call.1} parent=1 // pred_region
      %s42 = scalar_lea.smem [#allocation2], 0
      %43 = sst [smem:[%s42]] 0.0
      %s44 = scalar_lea.smem [#allocation2], 1
      %45 = sst [smem:[%s44]] 0.0
    $region21: #{tpu_custom_call.1} parent=1 // pred_fallthru
      _
    %v46 = vld [vmem:[#allocation5] sm:$0xff]
    %v47 = vld [vmem:[#allocation8] sm:$0xff]
    %v48 = vlaneseq
    %v49 = vand.u32 %v48, 127
    %s50 = smul.u32 0, 128
    %v51 = vstv %s50
    %v52 = vadd.s32 %v49, %v51
    %vm53 = vcmp.lt.s32.totalorder %v52, 8
    %v54 = vsub.f32 %v46, %v47
    %v55 = vand.u32 2147483647, %v54
    %vm56 = vcmp.lt.f32.partialorder %v55, 1.0
    %v57 = vmul.f32 %v54, 0.5
    %v58 = vmul.f32 %v57, %v54
    %v59 = vsub.f32 %v55, 0.5
    %v60 = vsel %vm56, %v58, %v59
    %v61 = vsel %vm53, 1, 0
    %vm62 = vcmp.eq.s32.totalorder %v61, 1
    %v63 = vsel %vm62, %v60, 0.0
    %s64 = sld [smem:[#allocation2]]
    %vm65 = vcmask 1043456
    %v66 = vsel %vm65, %v63, 0.0
    %67 = vadd.xlane.f32.xlu0 %v66
    %v68 = vpop.xlane.xlu0 %67
    %v69 = vrot.slane %v68, 4
    %v70 = vadd.f32 %v68, %v69
    %v71 = vrot.slane %v70, 2
    %v72 = vadd.f32 %v70, %v71
    %v73 = vrot.slane %v72, 1
    %v74 = vadd.f32 %v72, %v73
    %s75 = vtos %v74
    %s76 = sadd.f32 %s64, %s75
    %s77 = scalar_lea.smem [#allocation2], 0
    %78 = sst [smem:[%s77]] %s76
    %v79 = vmul.f32 %v46, 0.5
    %v81 = vrot.slane %v79, 2
    %v83 = vsub.f32 %v46, %v81
    %v84 = vadd.f32 %v46, %v81
    %v85 = vmul.f32 %v47, 0.5
    %v87 = vrot.slane %v85, 2
    %v89 = vsub.f32 %v47, %v87
    %v90 = vadd.f32 %v47, %v87
    %v91 = vmax.f32 %v83, %v89
    %v92 = vmin.f32 %v84, %v90
    %v93 = vsub.f32 %v92, %v91
    %v94 = vmax.f32 %v93, 0.0
    %v96 = vrot.slane %v94, 1
    %v98 = vmul.f32 %v94, %v96
    %v99 = vsub.f32 %v84, %v83
    %v101 = vrot.slane %v99, 1
    %v103 = vmul.f32 %v99, %v101
    %v104 = vsub.f32 %v90, %v89
    %v106 = vrot.slane %v104, 1
    %v108 = vmul.f32 %v104, %v106
    %v109 = vadd.f32 %v103, %v108
    %v110 = vsub.f32 %v109, %v98
    %v111 = vadd.f32 %v110, 1e-06
    %v112 = vrcp.pop %v111
    %v113 = vmul.f32 %v98, %v112
    %v114 = vmax.f32 %v113, 0.0
    %v115 = vmin.f32 %v114, 1.0
    %s116 = sld [smem:[#allocation4]]
    %p117 = scmp.ne.s32.totalorder %s116, 0
    %s118 = scalar_select %p117, 1, 0
    %v119 = vstv %s118
    %vm120 = vcmp.eq.s32.totalorder %v119, 1
    %v122 = vrot.slane %v47, 4
    %v124 = vsel %vm120, %v115, %v122
    %v125 = vxor.u32 %v46, 2147483648
    %v126 = vmul.f32 %v125, 1.442695
    %v127 = vpow.pop %v126
    %v128 = vadd.f32 %v127, 1.0
    %v129 = vrcp.pop %v128
    %v130 = vmul.f32 1.0, %v129
    %v132 = vrot.slane %v124, 4
    %v134 = vsub.f32 %v130, %v132
    %v135 = vmul.f32 %v134, %v134
    %v136 = vsel %vm53, %v135, 0.0
    %s137 = sld [smem:[#allocation2 + $0x1]]
    %v139 = vrot.slane %v136, 4
    %vm141 = vcmask 1040384
    %v142 = vsel %vm141, %v139, 0.0
    %143 = vadd.xlane.f32.xlu0 %v142
    %v144 = vpop.xlane.xlu0 %143
    %v145 = vrot.slane %v144, 4
    %v146 = vadd.f32 %v144, %v145
    %v147 = vrot.slane %v146, 2
    %v148 = vadd.f32 %v146, %v147
    %v149 = vrot.slane %v148, 1
    %v150 = vadd.f32 %v148, %v149
    %s151 = vtos %v150
    %s152 = sadd.f32 %s137, %s151
    %s153 = scalar_lea.smem [#allocation2], 1
    %154 = sst [smem:[%s153]] %s152
    // Predicated region
    $region22: #{tpu_custom_call.1} parent=1 // pred_check
      %p155 = pneg %p38
    $region23: #{tpu_custom_call.1} parent=1 // pred_check_branch
      %157 = sbr.rel (%p155) target = $region25
    $region24: #{tpu_custom_call.1} parent=1 // pred_region
      %s158 = sld [smem:[#allocation2]]
      %s159 = smul.f32 %s158, 0.03125
      %s160 = sld [smem:[#allocation2 + $0x1]]
      %s161 = smul.f32 %s160, 0.125
      %s162 = smul.f32 %s161, 0.1
      %s163 = sadd.f32 %s159, %s162
      %s164 = scalar_lea.smem [#allocation10], 0
      %165 = sst [smem:[%s164]] %s163
      %s166 = scalar_lea.smem [#allocation10], 1
      %167 = sst [smem:[%s166]] %s159
      %s168 = scalar_lea.smem [#allocation10], 2
      %169 = sst [smem:[%s168]] %s161
    $region25: #{tpu_custom_call.1} parent=1 // pred_fallthru
      _
    // Predicated region
    $region26: #{tpu_custom_call.1} parent=1 // pred_check
      _
    $region27: #{tpu_custom_call.1} parent=1 // pred_check_branch
      %171 = sbr.rel (0) target = $region29
    $region28: #{tpu_custom_call.1} parent=1 // pred_region
      %s173 = ssub.s32 16, 16
      %174 = vsyncadd [#allocation7], %s173
      %177 = dma.smem_to_hbm [#allocation10], 16, %s3, [#allocation7]
    $region29: #{tpu_custom_call.1} parent=1 // pred_fallthru
      _
    // Predicated region
    $region30: #{tpu_custom_call.1} parent=1 // pred_check
      _
    $region31: #{tpu_custom_call.1} parent=1 // pred_check_branch
      %179 = sbr.rel (0) target = $region33
    $region32: #{tpu_custom_call.1} parent=1 // pred_region
      %180 = dma.done [#allocation7], 16
    $region33: #{tpu_custom_call.1} parent=1 // pred_fallthru
      _
    %181 = sfence
    %182 = vsyncpa [#allocation6], 1
    %183 = vsyncpa [#allocation9], 1
    %184 = vsyncpa [#allocation7], 1

</llo_original>
